<compile_context>
chip_gen: v7x
topology: tpu7x:2x2x1
jax: 0.10.0
libtpu: 0.0.40
codegen_flags: <defaults>
</compile_context>

<pallas_src>
import math

import jax
import jax.numpy as jnp
from jax.experimental import pallas as pl
from jax.experimental.pallas import tpu as pltpu

HIDDEN = 32      # hidden_dim (kept small; module default 256)
ENC_DIM = 8      # encoder out_dim (stand-in encoder)
OUT_DIM = 3
NUM_LAYER = 3


def _round_up(x, m):
    return ((x + m - 1) // m) * m


# ---------------------------------------------------------------------------
# Pallas kernel 1: transposed matmul + bias  (3x3 convs via im2col)
#   Y = W @ X + b   with X: (K, M)  ->  lane-dense output (Cout, M)
#   W / X are bf16 (native MXU path), accumulation + bias add in f32.
# ---------------------------------------------------------------------------
def _matT_bias_kernel(x_ref, w_ref, b_ref, o_ref):
    o_ref[...] = (
        jnp.dot(w_ref[...], x_ref[...], preferred_element_type=jnp.float32)
        + b_ref[...]
    )


def pallas_matT_bias(w_bf16, x_bf16, b, *, tile_m):
    Cout, K = w_bf16.shape
    Kx, M = x_bf16.shape
    assert Kx == K and M % tile_m == 0
    return pl.pallas_call(
        _matT_bias_kernel,
        out_shape=jax.ShapeDtypeStruct((Cout, M), jnp.float32),
        grid=(M // tile_m,),
        in_specs=[
            pl.BlockSpec((K, tile_m), lambda i: (0, i)),
            pl.BlockSpec((Cout, K), lambda i: (0, 0)),
            pl.BlockSpec((Cout, 1), lambda i: (0, 0)),
        ],
        out_specs=pl.BlockSpec((Cout, tile_m), lambda i: (0, i)),
        compiler_params=pltpu.CompilerParams(dimension_semantics=("parallel",)),
    )(x_bf16, w_bf16, b.reshape(Cout, 1).astype(jnp.float32))


def conv3x3_cf(x_cf, w_conv, b, *, tile_m=2048):
    """3x3 conv, stride 1, padding 1 (PyTorch Conv2d semantics), channels-first.

    x_cf: (Cin, B, H, W) f32; w_conv: (Cout, Cin, 3, 3).  Returns (Cout, B*H*W) f32."""
    Cin, B, H, W = x_cf.shape
    Cout = w_conv.shape[0]
    xp = jnp.pad(x_cf, ((0, 0), (0, 0), (1, 1), (1, 1)))
    cols = [xp[:, :, kh:kh + H, kw:kw + W] for kh in range(3) for kw in range(3)]
    # TODO(synk): im2col still materializes a 9x patch tensor; a halo-tile Pallas
    # conv (load (tile_h+2, W+2, Cin) once, 9 shifted matmuls) would read each
    # feature pixel once.
    patches = jnp.stack(cols, axis=1).reshape(Cin * 9, B * H * W)  # rows: (cin, kh*3+kw)
    w_mat = w_conv.reshape(Cout, Cin * 9)                          # same row order
    M = B * H * W
    Mp128 = _round_up(M, 128)
    tm = min(tile_m, Mp128)
    if Mp128 >= 256:            # keep >= 2 parallel grid steps for 2-TC chips (v7x)
        tm = min(tm, max(128, (Mp128 // 2) // 128 * 128))
    Mp = _round_up(M, tm)
    if Mp != M:
        patches = jnp.pad(patches, ((0, 0), (0, Mp - M)))
    y = pallas_matT_bias(w_mat.astype(jnp.bfloat16),
                         patches.astype(jnp.bfloat16), b, tile_m=tm)  # (Cout, Mp)
    return y[:, :M]


# ---------------------------------------------------------------------------
# Pallas kernel 2: fused LTE query path (all 4 ensemble shifts + area weighting)
#   per shift j:
#     arg = pi * (freq[:h/2]*rel_h + freq[h/2:]*rel_w + phase)
#     x_j = coef * cat(cos(arg), sin(arg))      -> written into a shared scratch
#   one bf16 matmul per MLP layer over the 4x-wide operand, then
#   out = sum_j pred_j * area[3-j] / sum(area)  (local-ensemble swap)
# Layout: channels on sublanes, queries on lanes (lane-dense stores).
# ---------------------------------------------------------------------------
def _ltep_query_kernel(cf_ref, rel_ref, ph_ref,
                       w0_ref, b0_ref, w1_ref, b1_ref, w2_ref, b2_ref,
                       w3_ref, b3_ref, o_ref, x_ref):
    hidden = w0_ref.shape[0]
    h2 = ph_ref.shape[1]
    out_dim = o_ref.shape[1]
    tn = o_ref.shape[2]
    pi = jnp.float32(math.pi)

    rel = rel_ref[0]            # (4, 2, tn) f32
    phase = ph_ref[0]           # (h2, 1) f32 -> lane-broadcast in the add

    # --- modulate: all 4 shifts into one (hidden, 4*tn) bf16 operand ---------
    for j in range(4):                                   # static unroll
        cfj = cf_ref[0, j]                               # (2*hidden, tn) bf16
        coef = cfj[:hidden]
        freq = cfj[hidden:]
        rh = rel[j, 0:1, :]                              # (1, tn)
        rw = rel[j, 1:2, :]
        arg = pi * (freq[:h2].astype(jnp.float32) * rh
                    + freq[h2:].astype(jnp.float32) * rw + phase)
        lo, hi = j * tn, (j + 1) * tn                    # static lane offsets
        x_ref[:h2, lo:hi] = (coef[:h2].astype(jnp.float32)
                             * jnp.cos(arg)).astype(jnp.bfloat16)
        x_ref[h2:, lo:hi] = (coef[h2:].astype(jnp.float32)
                             * jnp.sin(arg)).astype(jnp.bfloat16)

    # --- one bf16 MXU matmul per layer over the 4x-wide operand --------------
    x = x_ref[...]
    h = jnp.maximum(jnp.dot(w0_ref[...], x,
                            preferred_element_type=jnp.float32) + b0_ref[...], 0.0)
    h = jnp.maximum(jnp.dot(w1_ref[...], h.astype(jnp.bfloat16),
                            preferred_element_type=jnp.float32) + b1_ref[...], 0.0)
    h = jnp.maximum(jnp.dot(w2_ref[...], h.astype(jnp.bfloat16),
                            preferred_element_type=jnp.float32) + b2_ref[...], 0.0)
    pred = (jnp.dot(w3_ref[...], h.astype(jnp.bfloat16),
                    preferred_element_type=jnp.float32) + b3_ref[...])  # (out_dim, 4*tn)

    # --- local-ensemble area weighting (swapped), one EUP reciprocal ---------
    areas = [jnp.abs(rel[j, 0:1, :] * rel[j, 1:2, :]) + 1e-9 for j in range(4)]
    inv_tot = pl.reciprocal(areas[0] + areas[1] + areas[2] + areas[3], approx=True)
    acc = jnp.zeros((out_dim, tn), jnp.float32)
    for j in range(4):
        acc = acc + pred[:, j * tn:(j + 1) * tn] * (areas[3 - j] * inv_tot)
    o_ref[0] = acc


def _pick_tile_n(N, B, hidden):
    """Lane-tile for the query kernel: fill a VMEM budget, but keep enough
    parallel grid steps so 2-TC chips (v7x) can shard the grid."""
    Np0 = _round_up(N, 128)
    bytes_per_lane = (2 * 4 * 2 * hidden * 2     # cf block bf16, double-buffered
                      + 2 * 4 * 2 * 4            # rel block f32, double-buffered
                      + 2 * OUT_DIM * 4          # out block f32, double-buffered
                      + 4 * hidden * 2)          # (hidden, 4*tn) bf16 scratch
    budget = 20 << 20                            # comfortably inside v7x's 64 MiB VMEM
    tn = (budget // bytes_per_lane) // 128 * 128
    tn = max(128, min(4096, tn, Np0))
    min_steps = -(-4 // max(B, 1))               # ceil(4 / B) lane-tiles if possible
    cap = max(128, (Np0 // min_steps) // 128 * 128)
    return min(tn, cap)


def pallas_query_mlp_fused(cf_all, rel_all, phase, mlp, *, tile_n):
    # cf_all: (B, 4, 2*hidden, Np) bf16 (coef rows 0..hidden-1, freq rows hidden..)
    # rel_all: (B, 4, 2, Np) f32; phase: (B, hidden//2, 1) f32
    B, S, two_h, Np = cf_all.shape
    assert S == 4 and Np % tile_n == 0
    hidden = two_h // 2
    h2 = hidden // 2
    w0, b0, w1, b1, w2, b2, w3, b3 = mlp
    out_dim = w3.shape[0]
    bf = jnp.bfloat16

    cf_spec = pl.BlockSpec((1, 4, two_h, tile_n), lambda b, i: (b, 0, 0, i))
    r_spec = pl.BlockSpec((1, 4, 2, tile_n), lambda b, i: (b, 0, 0, i))
    p_spec = pl.BlockSpec((1, h2, 1), lambda b, i: (b, 0, 0))

    def w_spec(shape):
        return pl.BlockSpec(shape, lambda b, i: (0, 0))

    # explicit, generation-aware VMEM limit (v7x only has 64 MiB physical)
    need = (2 * 4 * two_h * tile_n * 2        # cf bf16 (double-buffered)
            + 2 * 4 * 2 * tile_n * 4          # rel f32
            + 2 * out_dim * tile_n * 4        # out f32
            + hidden * 4 * tile_n * 2         # x scratch bf16
            + 2 * h2 * 4
            + (3 * hidden * hidden + out_dim * hidden) * 2
            + (3 * hidden + out_dim) * 4)
    vmem_limit = int(min(48 << 20, max(32 << 20, 2 * need)))

    return pl.pallas_call(
        _ltep_query_kernel,
        out_shape=jax.ShapeDtypeStruct((B, out_dim, Np), jnp.float32),
        grid=(B, Np // tile_n),
        in_specs=[cf_spec, r_spec, p_spec,
                  w_spec(w0.shape), w_spec((hidden, 1)),
                  w_spec(w1.shape), w_spec((hidden, 1)),
                  w_spec(w2.shape), w_spec((hidden, 1)),
                  w_spec(w3.shape), w_spec((out_dim, 1))],
        out_specs=pl.BlockSpec((1, out_dim, tile_n), lambda b, i: (b, 0, i)),
        scratch_shapes=[pltpu.VMEM((hidden, 4 * tile_n), jnp.bfloat16)],
        compiler_params=pltpu.CompilerParams(
            dimension_semantics=("parallel", "parallel"),
            vmem_limit_bytes=vmem_limit),
    )(cf_all, rel_all, phase,
      w0.astype(bf), b0.reshape(hidden, 1),
      w1.astype(bf), b1.reshape(hidden, 1),
      w2.astype(bf), b2.reshape(hidden, 1),
      w3.astype(bf), b3.reshape(out_dim, 1))


# ---------------------------------------------------------------------------
# JAX glue: make_coord, nearest/bilinear grid_sample index rules, gathers
# ---------------------------------------------------------------------------
def make_coord_1d(n):
    r = 1.0 / n
    return -1.0 + r + 2.0 * r * jnp.arange(n, dtype=jnp.float32)


def _nearest_indices(cy, cx, H, W):
    # F.grid_sample(mode='nearest', align_corners=False) index rule
    iy = ((cy + 1.0) * H - 1.0) * 0.5
    ix = ((cx + 1.0) * W - 1.0) * 0.5
    iy = jnp.clip(jnp.round(iy).astype(jnp.int32), 0, H - 1)
    ix = jnp.clip(jnp.round(ix).astype(jnp.int32), 0, W - 1)
    return iy, ix


def _gather_nhwc(img, iy, ix):
    # img: (B,H,W,C), iy/ix: (B,Hq,Wq) int32 -> (B,Hq,Wq,C)
    return jax.vmap(lambda im, a, b: im[a, b])(img, iy, ix)


def grid_sample_bilinear_border(img, coord):
    # F.grid_sample(mode='bilinear', padding_mode='border', align_corners=False)
    # img: (B,H,W,C); coord: (B,Hq,Wq,2) last dim (y,x)
    B, H, W, C = img.shape
    y, x = coord[..., 0], coord[..., 1]
    iy = jnp.clip(((y + 1.0) * H - 1.0) * 0.5, 0.0, H - 1.0)
    ix = jnp.clip(((x + 1.0) * W - 1.0) * 0.5, 0.0, W - 1.0)
    y0 = jnp.floor(iy)
    x0 = jnp.floor(ix)
    wy = (iy - y0)[..., None]
    wx = (ix - x0)[..., None]
    y0i = jnp.clip(y0.astype(jnp.int32), 0, H - 1)
    x0i = jnp.clip(x0.astype(jnp.int32), 0, W - 1)
    y1i = jnp.clip(y0i + 1, 0, H - 1)
    x1i = jnp.clip(x0i + 1, 0, W - 1)
    v00 = _gather_nhwc(img, y0i, x0i)
    v01 = _gather_nhwc(img, y0i, x1i)
    v10 = _gather_nhwc(img, y1i, x0i)
    v11 = _gather_nhwc(img, y1i, x1i)
    return (v00 * (1 - wy) * (1 - wx) + v01 * (1 - wy) * wx
            + v10 * wy * (1 - wx) + v11 * wy * wx)


def ltep_forward(params, inp_nchw, coord, cell):
    B, Cin, H, W = inp_nchw.shape
    Hq, Wq = coord.shape[1], coord.shape[2]
    N = Hq * Wq
    hidden = HIDDEN
    h2 = hidden // 2

    inp_nchw = inp_nchw.astype(jnp.float32)
    inp_cf = jnp.transpose(inp_nchw, (1, 0, 2, 3))                  # (3, B, H, W)

    # TODO(synk): original builds encoder from arbitrary `encoder_spec`; a single
    # spatial-preserving 3x3 conv is used as the stand-in encoder here.
    feat = conv3x3_cf(inp_cf, params["enc_w"], params["enc_b"])     # (E, B*H*W)
    E = feat.shape[0]

    # coef + freq convs fused into one lane-dense matmul (Cout = 2*hidden).
    w_cf = jnp.concatenate([params["coef_w"], params["freq_w"]], axis=0)
    b_cf = jnp.concatenate([params["coef_b"], params["freq_b"]], axis=0)
    cf = conv3x3_cf(feat.reshape(E, B, H, W), w_cf, b_cf)           # (2*hidden, B*H*W)
    # bf16 BEFORE the gather: halves the gathered-tensor HBM writeback.
    cf_b = cf.reshape(2 * hidden, B, H * W).transpose(1, 0, 2).astype(jnp.bfloat16)

    pos_y = make_coord_1d(H)     # feature pixel centers along H
    pos_x = make_coord_1d(W)
    rx_half = 1.0 / H            # 2 / H / 2
    ry_half = 1.0 / W
    eps_shift = 1e-6

    coord_y = coord[..., 0].reshape(B, N)
    coord_x = coord[..., 1].reshape(B, N)

    rel_cell = cell * jnp.array([H, W], dtype=jnp.float32)
    phase = (rel_cell @ params["phase_w"].T).reshape(B, h2, 1)       # (B, h2, 1)

    shifts = [(-1, -1), (-1, 1), (1, -1), (1, 1)]   # vx outer, vy inner (PyTorch order)
    gather = jax.vmap(lambda m, f: m[:, f])
    # TODO(synk): biggest remaining lever is deduplicating this gather inside the
    # Pallas kernel (scalar-prefetched LR patch offsets + in-kernel corner select)
    # so coef/freq are not streamed 4x-duplicated through HBM.
    cf_s, rel_s = [], []
    for vx, vy in shifts:
        cy = jnp.clip(coord_y + vx * rx_half + eps_shift, -1 + 1e-6, 1 - 1e-6)
        cx = jnp.clip(coord_x + vy * ry_half + eps_shift, -1 + 1e-6, 1 - 1e-6)
        iy, ix = _nearest_indices(cy, cx, H, W)                      # (B, N) int32
        flat = iy * W + ix
        cf_s.append(gather(cf_b, flat))                              # (B, 2*hidden, N) bf16
        rel_h = (coord_y - pos_y[iy]) * H                            # (B, N)
        rel_w = (coord_x - pos_x[ix]) * W
        rel_s.append(jnp.stack([rel_h, rel_w], axis=1))              # (B, 2, N)

    cf_all = jnp.stack(cf_s, axis=1)                                 # (B, 4, 2*hidden, N) bf16
    rel_all = jnp.stack(rel_s, axis=1)                               # (B, 4, 2, N) f32

    tile_n = _pick_tile_n(N, B, hidden)
    Np = _round_up(N, tile_n)
    if Np != N:
        pad = Np - N
        cf_all = jnp.pad(cf_all, ((0, 0), (0, 0), (0, 0), (0, pad)))
        rel_all = jnp.pad(rel_all, ((0, 0), (0, 0), (0, 0), (0, pad)))

    out_q = pallas_query_mlp_fused(cf_all, rel_all, phase, params["mlp"],
                                   tile_n=tile_n)                    # (B, 3, Np)
    ret = out_q[:, :, :N].reshape(B, OUT_DIM, Hq, Wq)                # NCHW already

    inp_nhwc = jnp.transpose(inp_nchw, (0, 2, 3, 1))
    resid = grid_sample_bilinear_border(inp_nhwc, coord)             # (B, Hq, Wq, 3)
    return ret + jnp.transpose(resid, (0, 3, 1, 2))                  # (B, 3, Hq, Wq)


# ---------------------------------------------------------------------------
# Deterministic parameter init (shapes follow the PyTorch __init__)
# ---------------------------------------------------------------------------
def init_params(key):
    keys = jax.random.split(key, 16)

    def conv_w(k, cout, cin, kh, kw):
        bound = 1.0 / math.sqrt(cin * kh * kw)
        return jax.random.uniform(k, (cout, cin, kh, kw), jnp.float32, -bound, bound)

    def vec(k, n, fan_in):
        bound = 1.0 / math.sqrt(fan_in)
        return jax.random.uniform(k, (n,), jnp.float32, -bound, bound)

    params = {
        "enc_w": conv_w(keys[0], ENC_DIM, 3, 3, 3),
        "enc_b": vec(keys[1], ENC_DIM, 3 * 9),
        "coef_w": conv_w(keys[2], HIDDEN, ENC_DIM, 3, 3),
        "coef_b": vec(keys[3], HIDDEN, ENC_DIM * 9),
        "freq_w": conv_w(keys[4], HIDDEN, ENC_DIM, 3, 3),
        "freq_b": vec(keys[5], HIDDEN, ENC_DIM * 9),
        "phase_w": jax.random.uniform(keys[6], (HIDDEN // 2, 2), jnp.float32,
                                      -1.0 / math.sqrt(2.0), 1.0 / math.sqrt(2.0)),
    }
    # imaging MLP: 3 x (1x1 conv hidden->hidden + ReLU) then 1x1 conv hidden->3
    # stored as (out, in) matrices for the transposed (W @ X) kernel layout.
    mlp = []
    kidx = 7
    for _ in range(NUM_LAYER):
        w = conv_w(keys[kidx], HIDDEN, HIDDEN, 1, 1); kidx += 1
        b = vec(keys[kidx], HIDDEN, HIDDEN); kidx += 1
        mlp += [w[:, :, 0, 0], b]
    w = conv_w(keys[kidx], OUT_DIM, HIDDEN, 1, 1); kidx += 1
    b = vec(keys[kidx], OUT_DIM, HIDDEN)
    mlp += [w[:, :, 0, 0], b]
    params["mlp"] = tuple(mlp)
    return params


if __name__ == "__main__":
    key = jax.random.PRNGKey(0)
    pkey, ikey = jax.random.split(key)
    params = init_params(pkey)

    B, Cin, H, W = 2, 3, 8, 8
    Hq = Wq = 16

    inp = jax.random.normal(ikey, (B, Cin, H, W), jnp.float32)
    cy = make_coord_1d(Hq)
    cx = make_coord_1d(Wq)
    coord = jnp.stack(jnp.meshgrid(cy, cx, indexing="ij"), axis=-1)   # (Hq,Wq,2) (y,x)
    coord = jnp.broadcast_to(coord, (B, Hq, Wq, 2))
    cell = jnp.tile(jnp.array([[2.0 / Hq, 2.0 / Wq]], jnp.float32), (B, 1))

    out = ltep_forward(params, inp, coord, cell)
    out = jax.block_until_ready(out)
    assert out.shape == (B, OUT_DIM, Hq, Wq), out.shape
    assert bool(jnp.all(jnp.isfinite(out)))
    print("KERNEL_OK")
</pallas_src>

<mosaic_0001>
module attributes {stable_mosaic.version = 11 : i64} {
  func.func @_matT_bias_kernel(%arg0: i32, %arg1: memref<27x128xbf16, #tpu.memory_space<vmem>>, %arg2: memref<8x27xbf16, #tpu.memory_space<vmem>>, %arg3: memref<8x1xf32, #tpu.memory_space<vmem>>, %arg4: memref<8x128xf32, #tpu.memory_space<vmem>>) attributes {dimension_semantics = [#tpu.dimension_semantics<parallel>], iteration_bounds = array<i64: 1>, scalar_prefetch = 0 : i64, scratch_operands = 0 : i64, tpu.core_type = #tpu.core_type<tc>, window_params = [{transform_indices = @transform_0, window_bounds = array<i64: 27, 128>}, {pipeline_mode = #tpu.pipeline_mode<synchronous>, transform_indices = @transform_1, window_bounds = array<i64: 8, 27>}, {pipeline_mode = #tpu.pipeline_mode<synchronous>, transform_indices = @transform_2, window_bounds = array<i64: 8, 1>}, {transform_indices = @transform_3, window_bounds = array<i64: 8, 128>}]} {
    %c0 = arith.constant 0 : index
    %c0_0 = arith.constant 0 : index
    %0 = vector.load %arg2[%c0, %c0_0] : memref<8x27xbf16, #tpu.memory_space<vmem>>, vector<8x27xbf16>
    %c0_1 = arith.constant 0 : index
    %c0_2 = arith.constant 0 : index
    %1 = vector.load %arg1[%c0_1, %c0_2] : memref<27x128xbf16, #tpu.memory_space<vmem>>, vector<27x128xbf16>
    %cst = arith.constant dense<0.000000e+00> : vector<8x128xf32>
    %2 = tpu.matmul %0, %1, %cst {dimension_numbers = #tpu.dot_dimension_numbers<[1], [0], [0], [1], [0, 0, 1, 1], [], []>} : vector<8x27xbf16>, vector<27x128xbf16>, vector<8x128xf32> -> vector<8x128xf32>
    %c0_3 = arith.constant 0 : index
    %c0_4 = arith.constant 0 : index
    %3 = vector.load %arg3[%c0_3, %c0_4] : memref<8x1xf32, #tpu.memory_space<vmem>>, vector<8x1xf32>
    %4 = vector.broadcast %3 : vector<8x1xf32> to vector<8x128xf32>
    %5 = arith.addf %2, %4 : vector<8x128xf32>
    %c0_5 = arith.constant 0 : index
    %c0_6 = arith.constant 0 : index
    %6 = vector.load %arg4[%c0_5, %c0_6] : memref<8x128xf32, #tpu.memory_space<vmem>>, vector<8x128xf32>
    tpu.vector_store %arg4[%c0_5, %c0_6], %5 {strides = array<i32>} : memref<8x128xf32, #tpu.memory_space<vmem>>, vector<8x128xf32>,
    return
  }
  func.func @transform_0(%arg0: i32) -> (i32, i32) {
    %c0_i32 = arith.constant 0 : i32
    %c0_i32_0 = arith.constant 0 : i32
    return %c0_i32, %arg0 : i32, i32
  }
  func.func @transform_1(%arg0: i32) -> (i32, i32) {
    %c0_i32 = arith.constant 0 : i32
    %c0_i32_0 = arith.constant 0 : i32
    %c0_i32_1 = arith.constant 0 : i32
    return %c0_i32, %c0_i32_0 : i32, i32
  }
  func.func @transform_2(%arg0: i32) -> (i32, i32) {
    %c0_i32 = arith.constant 0 : i32
    %c0_i32_0 = arith.constant 0 : i32
    %c0_i32_1 = arith.constant 0 : i32
    return %c0_i32, %c0_i32_0 : i32, i32
  }
  func.func @transform_3(%arg0: i32) -> (i32, i32) {
    %c0_i32 = arith.constant 0 : i32
    %c0_i32_0 = arith.constant 0 : i32
    return %c0_i32, %arg0 : i32, i32
  }
}

</mosaic_0001>

<llo_original>
// kernel: tpu_custom_call.1
$region0: #{tpu_custom_call.1}
  #allocation0 [shape = 'u32[]', space=smem, size = 0x4, offset = 0x4, fixed_abs, tag = 'smem constant byte address 0x4 - core index']
  #allocation1 [shape = 'u32[144,128]{1,0:T(1,128)}', space=vmem, size = 0x12000, scoped, tag = 'internal scratch']
  %s0 = inlined_call_operand.hbm [shape: bf16[27,128], index: 0, kind: input, shape index: {}]
  %s1 = inlined_call_operand.vmem [shape: bf16[8,27], index: 1, kind: input, shape index: {}]
  %s2 = inlined_call_operand.vmem [shape: f32[8,1], index: 2, kind: input, shape index: {}]
  %s3 = inlined_call_operand.hbm [shape: f32[8,128], index: 3, kind: output, shape index: {}]
  %s4 = sld [smem:[#allocation0]]
  $region26: #{tpu_custom_call.1} parent=0
    _
  %s6 = ssub.s32 1, %s4
  %s7 = scalar_select 0, %s6, %s4
  $region1: #{tpu_custom_call.1} parent=0
    #allocation2 [shape = 'u8[8192]{0}', space=vmem, size = 0x2000, scoped, tag = 'input window, operand 0, single buffered']
    #allocation3 [shape = 's32[1]{0}', space=sflag, size = 0x4, scoped, tag = 'scoped memory for tpu_custom_call.1']
    #allocation4 [shape = 's32[1]{0}', space=sflag, size = 0x4, scoped, tag = 'scoped memory for tpu_custom_call.1']
    #allocation5 [shape = 'u8[4096]{0}', space=vmem, size = 0x1000, scoped, tag = 'output window, operand 0, single buffered']
    %8 = vsyncpa [#allocation3], 0
    %9 = vsyncpa [#allocation4], 0
    // Predicated region
    $region2: #{tpu_custom_call.1} parent=1 // pred_check
      _
    $region3: #{tpu_custom_call.1} parent=1 // pred_check_branch
      %11 = sbr.rel (0) target = $region5
    $region4: #{tpu_custom_call.1} parent=1 // pred_region
      %s13 = ssub.s32 256, 256
      %14 = vsyncadd [#allocation3], %s13
      %s15 = sshll.u32 [#allocation2], 4
      %s16 = int_to_ptr.vmem [resolvable:$true] %s15
      %21 = dma.hbm_to_vmem [thread:$0]  %s0, 256, %s16, [#allocation3], 64, 64, 4
    $region5: #{tpu_custom_call.1} parent=1 // pred_fallthru
      _
    // Predicated region
    $region6: #{tpu_custom_call.1} parent=1 // pred_check
      _
    $region7: #{tpu_custom_call.1} parent=1 // pred_check_branch
      %23 = sbr.rel (0) target = $region9
    $region8: #{tpu_custom_call.1} parent=1 // pred_region
      _
    $region9: #{tpu_custom_call.1} parent=1 // pred_fallthru
      _
    // Predicated region
    $region10: #{tpu_custom_call.1} parent=1 // pred_check
      _
    $region11: #{tpu_custom_call.1} parent=1 // pred_check_branch
      %25 = sbr.rel (0) target = $region13
    $region12: #{tpu_custom_call.1} parent=1 // pred_region
      _
    $region13: #{tpu_custom_call.1} parent=1 // pred_fallthru
      _
    // Predicated region
    $region14: #{tpu_custom_call.1} parent=1 // pred_check
      _
    $region15: #{tpu_custom_call.1} parent=1 // pred_check_branch
      %27 = sbr.rel (0) target = $region17
    $region16: #{tpu_custom_call.1} parent=1 // pred_region
      %28 = dma.done [#allocation3], 256
    $region17: #{tpu_custom_call.1} parent=1 // pred_fallthru
      _
    %v30 = vld [vmem:[%s1] sm:$0xf]
    %v31 = vld [vmem:[#allocation2] sm:$0xf]
    %v32 = vld [vmem:[#allocation2 + $0x4] sm:$0xf]
    %v33 = vld [vmem:[#allocation2 + $0x8] sm:$0xf]
    %v34 = vld [vmem:[#allocation2 + $0xc] sm:$0x3]
    %v35 = vld [vmem:[%s2] sm:$0xff]
    %37 = vset.pattern.permute.xlu0 0
    %38 = vperm.xlu0 %37, %v35
    %v39 = vpop.permute.xlu0 %38
    %v45 = vunpack.c.l.b16 %v31
    %v46 = vunpack.c.l.b16 %v32
    %v47 = vunpack.c.l.b16 %v33
    %v48 = vunpack.c.l.b16 %v34
    %v49 = vpack.c.b16 %v46, %v45
    %v50 = vpack.c.b16 %v48, %v47
    %vm52 = vcmask 220160
    %v54 = vsel %vm52, %v30, 0
    %vm56 = vcmask 1044480
    %vm57 = vcmask 1045504
    %v58 = vsel %vm56, 4294967295, 65535
    %v59 = vsel %vm57, %v58, 0
    %v61 = vand.u32 %v50, %v59
    %63 = vmatprep.subr.bf16.mxu0 0
    %64 = vmatpush1.bf16.msra.mxu0 %v49
    %65 = vmatprep.subr.bf16.mxu0 0
    %66 = vmatpush1.bf16.msra.mxu0 %v61
    %67 = vmatprep.subr.bf16.mxu0 0
    %68 = vmatpush1.bf16.msra.mxu0 0
    %69 = vmatprep.subr.bf16.mxu0 0
    %70 = vmatpush1.bf16.msra.mxu0 0
    %71 = vmatprep.subr.bf16.mxu0 0
    %72 = vmatpush1.bf16.msra.mxu0 0
    %73 = vmatprep.subr.bf16.mxu0 0
    %74 = vmatpush1.bf16.msra.mxu0 0
    %75 = vmatprep.subr.bf16.mxu0 0
    %76 = vmatpush1.bf16.msra.mxu0 0
    %77 = vmatprep.subr.bf16.mxu0 0
    %78 = vmatpush1.bf16.msra.mxu0 0
    %79 = vmatprep.subr.bf16.mxu0 0
    %80 = vmatpush1.bf16.msra.mxu0 0
    %81 = vmatprep.subr.bf16.mxu0 0
    %82 = vmatpush1.bf16.msra.mxu0 0
    %83 = vmatprep.subr.bf16.mxu0 0
    %84 = vmatpush1.bf16.msra.mxu0 0
    %85 = vmatprep.subr.bf16.mxu0 0
    %86 = vmatpush1.bf16.msra.mxu0 0
    %87 = vmatprep.subr.bf16.mxu0 0
    %88 = vmatpush1.bf16.msra.mxu0 0
    %89 = vmatprep.subr.bf16.mxu0 0
    %90 = vmatpush1.bf16.msra.mxu0 0
    %91 = vmatprep.subr.bf16.mxu0 0
    %92 = vmatpush1.bf16.msra.mxu0 0
    %93 = vmatprep.subr.bf16.mxu0 0
    %94 = vmatpush1.bf16.msra.mxu0 0
    %95 = vmatprep.mubr.bf16.mxu0 0
    %96 = vmatmul.mubr.bf16.gmra.mrb[0].mxu0 %v54
    %v97 = vpop.f32.mrb[0].mxu0
    %v98 = vadd.f32 %v39, %v97
    %v99 = vpop.f32.mrb[0].mxu0
    %v100 = vpop.f32.mrb[0].mxu0
    %v101 = vpop.f32.mrb[0].mxu0
    %102 = vdwg.mxu0
    %103 = vst [vmem:[#allocation5] sm:$0xff] %v98
    // Predicated region
    $region18: #{tpu_custom_call.1} parent=1 // pred_check
      _
    $region19: #{tpu_custom_call.1} parent=1 // pred_check_branch
      %105 = sbr.rel (0) target = $region21
    $region20: #{tpu_custom_call.1} parent=1 // pred_region
      %s107 = ssub.s32 128, 128
      %108 = vsyncadd [#allocation4], %s107
      %s110 = sshll.u32 [#allocation5], 4
      %s111 = int_to_ptr.vmem [resolvable:$true] %s110
      %113 = dma.vmem_to_hbm [thread:$0]  %s111, 128, %s3, [#allocation4]
    $region21: #{tpu_custom_call.1} parent=1 // pred_fallthru
      _
    // Predicated region
    $region22: #{tpu_custom_call.1} parent=1 // pred_check
      _
    $region23: #{tpu_custom_call.1} parent=1 // pred_check_branch
      %115 = sbr.rel (0) target = $region25
    $region24: #{tpu_custom_call.1} parent=1 // pred_region
      %116 = dma.done [#allocation4], 128
    $region25: #{tpu_custom_call.1} parent=1 // pred_fallthru
      _
    %117 = vsyncpa [#allocation3], 1
    %118 = vsyncpa [#allocation4], 1

</llo_original>
